<compile_context>
chip_gen: v5e
topology: v5e:2x2
jax: 0.10.0
libtpu: 0.0.40
codegen_flags: <defaults>
</compile_context>

<pallas_src>
import jax
import jax.numpy as jnp
from jax.experimental import pallas as pl
from jax.experimental.pallas import tpu as pltpu


def lr_kernel(xt_ref, w1_ref, b1_ref, w2_ref, b2_ref, w3_ref, b3_ref, o_ref):
    # xt_ref: (dim, TM) bf16   -- batch on lanes, features on sublanes
    # w1_ref: (80, dim) bf16, b1_ref: (80, 1) f32
    # w2_ref: (10, 80) f32,  b2_ref: (10, 1) f32
    # w3_ref: (10, 1)  f32,  b3_ref: (1, 1)  f32
    # o_ref : (1, TM)  f32   -- lane-dense output slab

    # fc1 + bias + ReLU (bf16 MXU matmul, f32 accumulate, f32 elementwise)
    h1 = jnp.dot(w1_ref[...], xt_ref[...], preferred_element_type=jnp.float32)
    h1 = jnp.maximum(h1 + b1_ref[...], 0.0)                     # (80, TM)

    # dropout(p=0.1): identity in eval mode.

    # fc2 + bias + ReLU (tiny f32 matmul: only ~2 LHS vregs)
    h2 = jnp.dot(w2_ref[...], h1, preferred_element_type=jnp.float32)
    h2 = jnp.maximum(h2 + b2_ref[...], 0.0)                     # (10, TM)

    # fc3 (out_features=1): VPU multiply + sublane reduce instead of a
    # 1-wide MXU matmul.
    out = jnp.sum(h2 * w3_ref[...], axis=0, keepdims=True) + b3_ref[...]

    o_ref[...] = out.astype(o_ref.dtype)                        # (1, TM)


def lr_forward(x, params, *, tm=4096):
    """x: (N, dim) float32.  Returns (N,) float32, matching .squeeze(dim=1)."""
    w1, b1, w2, b2, w3, b3 = params
    n, dim = x.shape

    # Layout plumbing outside the kernel (single fused XLA pass over x):
    # batch -> lanes, features -> sublanes, bf16 for the streamed activations.
    xt = jnp.asarray(x.T, dtype=jnp.bfloat16)                   # (dim, N)
    w1b = jnp.asarray(w1, dtype=jnp.bfloat16)                   # (80, dim)

    # Batch tile: multiple of 128 lanes, capped at `tm`; pad N so it divides.
    tm_eff = min(tm, int(pl.cdiv(n, 128)) * 128)
    n_pad = int(pl.cdiv(n, tm_eff)) * tm_eff
    if n_pad != n:
        xt = jnp.pad(xt, ((0, 0), (0, n_pad - n)))

    resident = lambda a: pl.BlockSpec(a.shape, lambda i: (0, 0))

    out = pl.pallas_call(
        lr_kernel,
        out_shape=jax.ShapeDtypeStruct((1, n_pad), jnp.float32),
        grid=(n_pad // tm_eff,),
        in_specs=[
            pl.BlockSpec((dim, tm_eff), lambda i: (0, i)),      # streamed x tile
            resident(w1b), resident(b1),
            resident(w2), resident(b2),
            resident(w3), resident(b3),
        ],
        out_specs=pl.BlockSpec((1, tm_eff), lambda i: (0, i)),  # lane-dense
        compiler_params=pltpu.CompilerParams(
            dimension_semantics=("parallel",),
        ),
    )(xt, w1b, b1, w2, b2, w3, b3)

    return out[0, :n]                                           # squeeze(dim=1)


def init_params(key, dim):
    """torch.nn.Linear-style init, weights stored in torch's (out, in) layout."""
    def linear(key, fan_in, fan_out):
        kw, kb = jax.random.split(key)
        bound = 1.0 / (fan_in ** 0.5)
        w = jax.random.uniform(kw, (fan_out, fan_in), jnp.float32, -bound, bound)
        b = jax.random.uniform(kb, (fan_out, 1), jnp.float32, -bound, bound)
        return w, b

    k1, k2, k3 = jax.random.split(key, 3)
    w1, b1 = linear(k1, dim, 80)      # (80, dim), (80, 1)
    w2, b2 = linear(k2, 80, 10)       # (10, 80), (10, 1)
    w3, b3 = linear(k3, 10, 1)        # (1, 10),  (1, 1)
    return (w1, b1, w2, b2, w3.T, b3)  # w3 stored as a (10, 1) column


if __name__ == "__main__":
    key = jax.random.PRNGKey(0)
    k_x, k_p = jax.random.split(key)

    batch, dim = 256, 32
    x = jax.random.normal(k_x, (batch, dim), jnp.float32)
    params = init_params(k_p, dim)

    y = lr_forward(x, params)
    jax.block_until_ready(y)

    # Pure-JAX reference (dropout = identity in eval), applying the same bf16
    # rounding to x and w1 that the kernel uses, with f32 accumulation.
    w1, b1, w2, b2, w3, b3 = params
    hp = jax.lax.Precision.HIGHEST
    xr = x.astype(jnp.bfloat16).astype(jnp.float32)
    w1r = w1.astype(jnp.bfloat16).astype(jnp.float32)
    h1 = jnp.maximum(jnp.dot(xr, w1r.T, precision=hp) + b1[:, 0], 0.0)
    h2 = jnp.maximum(jnp.dot(h1, w2.T, precision=hp) + b2[:, 0], 0.0)
    ref = jnp.dot(h2, w3, precision=hp)[:, 0] + b3[0, 0]

    assert y.shape == (batch,), y.shape
    err = float(jnp.max(jnp.abs(y - ref)))
    assert jnp.allclose(y, ref, atol=1e-4, rtol=1e-4), err

    print("KERNEL_OK")
</pallas_src>

<mosaic_0001>
module attributes {stable_mosaic.version = 11 : i64} {
  func.func @lr_kernel(%arg0: i32, %arg1: memref<32x256xbf16, #tpu.memory_space<vmem>>, %arg2: memref<80x32xbf16, #tpu.memory_space<vmem>>, %arg3: memref<80x1xf32, #tpu.memory_space<vmem>>, %arg4: memref<10x80xf32, #tpu.memory_space<vmem>>, %arg5: memref<10x1xf32, #tpu.memory_space<vmem>>, %arg6: memref<10x1xf32, #tpu.memory_space<vmem>>, %arg7: memref<1x1xf32, #tpu.memory_space<vmem>>, %arg8: memref<1x256xf32, #tpu.memory_space<vmem>>) attributes {dimension_semantics = [#tpu.dimension_semantics<parallel>], iteration_bounds = array<i64: 1>, scalar_prefetch = 0 : i64, scratch_operands = 0 : i64, tpu.core_type = #tpu.core_type<tc>, window_params = [{transform_indices = @transform_0, window_bounds = array<i64: 32, 256>}, {pipeline_mode = #tpu.pipeline_mode<synchronous>, transform_indices = @transform_1, window_bounds = array<i64: 80, 32>}, {pipeline_mode = #tpu.pipeline_mode<synchronous>, transform_indices = @transform_2, window_bounds = array<i64: 80, 1>}, {pipeline_mode = #tpu.pipeline_mode<synchronous>, transform_indices = @transform_3, window_bounds = array<i64: 10, 80>}, {pipeline_mode = #tpu.pipeline_mode<synchronous>, transform_indices = @transform_4, window_bounds = array<i64: 10, 1>}, {pipeline_mode = #tpu.pipeline_mode<synchronous>, transform_indices = @transform_5, window_bounds = array<i64: 10, 1>}, {pipeline_mode = #tpu.pipeline_mode<synchronous>, transform_indices = @transform_6, window_bounds = array<i64: 1, 1>}, {transform_indices = @transform_7, window_bounds = array<i64: 1, 256>}]} {
    %c0 = arith.constant 0 : index
    %c0_0 = arith.constant 0 : index
    %0 = vector.load %arg2[%c0, %c0_0] : memref<80x32xbf16, #tpu.memory_space<vmem>>, vector<80x32xbf16>
    %c0_1 = arith.constant 0 : index
    %c0_2 = arith.constant 0 : index
    %1 = vector.load %arg1[%c0_1, %c0_2] : memref<32x256xbf16, #tpu.memory_space<vmem>>, vector<32x256xbf16>
    %cst = arith.constant dense<0.000000e+00> : vector<80x256xf32>
    %2 = tpu.matmul %0, %1, %cst {dimension_numbers = #tpu.dot_dimension_numbers<[1], [0], [0], [1], [0, 0, 1, 1], [], []>} : vector<80x32xbf16>, vector<32x256xbf16>, vector<80x256xf32> -> vector<80x256xf32>
    %c0_3 = arith.constant 0 : index
    %c0_4 = arith.constant 0 : index
    %3 = vector.load %arg3[%c0_3, %c0_4] : memref<80x1xf32, #tpu.memory_space<vmem>>, vector<80x1xf32>
    %4 = vector.broadcast %3 : vector<80x1xf32> to vector<80x256xf32>
    %5 = arith.addf %2, %4 : vector<80x256xf32>
    %cst_5 = arith.constant 0.000000e+00 : f32
    %6 = vector.broadcast %cst_5 : f32 to vector<80x256xf32>
    %7 = arith.maximumf %5, %6 : vector<80x256xf32>
    %c0_6 = arith.constant 0 : index
    %c0_7 = arith.constant 0 : index
    %8 = vector.load %arg4[%c0_6, %c0_7] : memref<10x80xf32, #tpu.memory_space<vmem>>, vector<10x80xf32>
    %cst_8 = arith.constant dense<0.000000e+00> : vector<10x256xf32>
    %9 = tpu.matmul %8, %7, %cst_8 {dimension_numbers = #tpu.dot_dimension_numbers<[1], [0], [0], [1], [0, 0, 1, 1], [], []>} : vector<10x80xf32>, vector<80x256xf32>, vector<10x256xf32> -> vector<10x256xf32>
    %c0_9 = arith.constant 0 : index
    %c0_10 = arith.constant 0 : index
    %10 = vector.load %arg5[%c0_9, %c0_10] : memref<10x1xf32, #tpu.memory_space<vmem>>, vector<10x1xf32>
    %11 = vector.broadcast %10 : vector<10x1xf32> to vector<10x256xf32>
    %12 = arith.addf %9, %11 : vector<10x256xf32>
    %cst_11 = arith.constant 0.000000e+00 : f32
    %13 = vector.broadcast %cst_11 : f32 to vector<10x256xf32>
    %14 = arith.maximumf %12, %13 : vector<10x256xf32>
    %c0_12 = arith.constant 0 : index
    %c0_13 = arith.constant 0 : index
    %15 = vector.load %arg6[%c0_12, %c0_13] : memref<10x1xf32, #tpu.memory_space<vmem>>, vector<10x1xf32>
    %16 = vector.broadcast %15 : vector<10x1xf32> to vector<10x256xf32>
    %17 = arith.mulf %14, %16 : vector<10x256xf32>
    %cst_14 = arith.constant dense<0.000000e+00> : vector<256xf32>
    %18 = vector.multi_reduction <add>, %17, %cst_14 [0] : vector<10x256xf32> to vector<256xf32>
    %19 = vector.shape_cast %18 : vector<256xf32> to vector<1x256xf32>
    %c0_15 = arith.constant 0 : index
    %c0_16 = arith.constant 0 : index
    %20 = vector.load %arg7[%c0_15, %c0_16] : memref<1x1xf32, #tpu.memory_space<vmem>>, vector<1x1xf32>
    %21 = vector.broadcast %20 : vector<1x1xf32> to vector<1x256xf32>
    %22 = arith.addf %19, %21 : vector<1x256xf32>
    %c0_17 = arith.constant 0 : index
    %c0_18 = arith.constant 0 : index
    %23 = vector.load %arg8[%c0_17, %c0_18] : memref<1x256xf32, #tpu.memory_space<vmem>>, vector<1x256xf32>
    tpu.vector_store %arg8[%c0_17, %c0_18], %22 {strides = array<i32>} : memref<1x256xf32, #tpu.memory_space<vmem>>, vector<1x256xf32>,
    return
  }
  func.func @transform_0(%arg0: i32) -> (i32, i32) {
    %c0_i32 = arith.constant 0 : i32
    %c0_i32_0 = arith.constant 0 : i32
    return %c0_i32, %arg0 : i32, i32
  }
  func.func @transform_1(%arg0: i32) -> (i32, i32) {
    %c0_i32 = arith.constant 0 : i32
    %c0_i32_0 = arith.constant 0 : i32
    %c0_i32_1 = arith.constant 0 : i32
    return %c0_i32, %c0_i32_0 : i32, i32
  }
  func.func @transform_2(%arg0: i32) -> (i32, i32) {
    %c0_i32 = arith.constant 0 : i32
    %c0_i32_0 = arith.constant 0 : i32
    %c0_i32_1 = arith.constant 0 : i32
    return %c0_i32, %c0_i32_0 : i32, i32
  }
  func.func @transform_3(%arg0: i32) -> (i32, i32) {
    %c0_i32 = arith.constant 0 : i32
    %c0_i32_0 = arith.constant 0 : i32
    %c0_i32_1 = arith.constant 0 : i32
    return %c0_i32, %c0_i32_0 : i32, i32
  }
  func.func @transform_4(%arg0: i32) -> (i32, i32) {
    %c0_i32 = arith.constant 0 : i32
    %c0_i32_0 = arith.constant 0 : i32
    %c0_i32_1 = arith.constant 0 : i32
    return %c0_i32, %c0_i32_0 : i32, i32
  }
  func.func @transform_5(%arg0: i32) -> (i32, i32) {
    %c0_i32 = arith.constant 0 : i32
    %c0_i32_0 = arith.constant 0 : i32
    %c0_i32_1 = arith.constant 0 : i32
    return %c0_i32, %c0_i32_0 : i32, i32
  }
  func.func @transform_6(%arg0: i32) -> (i32, i32) {
    %c0_i32 = arith.constant 0 : i32
    %c0_i32_0 = arith.constant 0 : i32
    %c0_i32_1 = arith.constant 0 : i32
    return %c0_i32, %c0_i32_0 : i32, i32
  }
  func.func @transform_7(%arg0: i32) -> (i32, i32) {
    %c0_i32 = arith.constant 0 : i32
    %c0_i32_0 = arith.constant 0 : i32
    return %c0_i32, %arg0 : i32, i32
  }
}

</mosaic_0001>

<llo_original>
// kernel: tpu_custom_call.1
$region0: #{tpu_custom_call.1}
  #allocation0 [shape = 'u32[]', space=smem, size = 0x4, offset = 0x4, fixed_abs, tag = 'smem constant byte address 0x4 - core index']
  #allocation1 [shape = 'u32[72,128]{1,0:T(1,128)}', space=vmem, size = 0x9000, scoped, tag = 'internal scratch']
  #allocation2 [shape = 'f32[1,1]{1,0:T(1,128)S(1)}', space=vmem, size = 0x200, scoped, tag = 'scoped memory for tpu_custom_call.1']
  %s0 = inlined_call_operand.vmem [shape: bf16[32,256], index: 0, kind: input, shape index: {}]
  %s1 = inlined_call_operand.vmem [shape: bf16[80,32], index: 1, kind: input, shape index: {}]
  %s2 = inlined_call_operand.vmem [shape: f32[80,1], index: 2, kind: input, shape index: {}]
  %s3 = inlined_call_operand.vmem [shape: f32[10,80], index: 3, kind: input, shape index: {}]
  %s4 = inlined_call_operand.vmem [shape: f32[10,1], index: 4, kind: input, shape index: {}]
  %s5 = inlined_call_operand.vmem [shape: f32[10,1], index: 5, kind: input, shape index: {}]
  %s6 = inlined_call_operand.<no memory space> [shape: f32[1,1], index: 6, kind: input, shape index: {}]
  %s7 = inlined_call_operand.hbm [shape: f32[1,256], index: 7, kind: output, shape index: {}]
  %s8 = sld [smem:[#allocation0]]
  $region38: #{tpu_custom_call.1} parent=0
    _
  %s10 = ssub.s32 1, %s8
  %s11 = scalar_select 0, %s10, %s8
  %v12 = vstv %s6
  %13 = vst [vmem:[#allocation2] sm:$0x1] %v12
  $region1: #{tpu_custom_call.1} parent=0
    #allocation3 [shape = 'u8[1024]{0}', space=vmem, size = 0x400, scoped, tag = 'output window, operand 0, single buffered']
    #allocation4 [shape = 's32[1]{0}', space=sflag, size = 0x4, scoped, tag = 'scoped memory for tpu_custom_call.1']
    %14 = vsyncpa [#allocation4], 0
    // Predicated region
    $region2: #{tpu_custom_call.1} parent=1 // pred_check
      _
    $region3: #{tpu_custom_call.1} parent=1 // pred_check_branch
      %16 = sbr.rel (0) target = $region5
    $region4: #{tpu_custom_call.1} parent=1 // pred_region
      _
    $region5: #{tpu_custom_call.1} parent=1 // pred_fallthru
      _
    // Predicated region
    $region6: #{tpu_custom_call.1} parent=1 // pred_check
      _
    $region7: #{tpu_custom_call.1} parent=1 // pred_check_branch
      %18 = sbr.rel (0) target = $region9
    $region8: #{tpu_custom_call.1} parent=1 // pred_region
      _
    $region9: #{tpu_custom_call.1} parent=1 // pred_fallthru
      _
    // Predicated region
    $region10: #{tpu_custom_call.1} parent=1 // pred_check
      _
    $region11: #{tpu_custom_call.1} parent=1 // pred_check_branch
      %20 = sbr.rel (0) target = $region13
    $region12: #{tpu_custom_call.1} parent=1 // pred_region
      _
    $region13: #{tpu_custom_call.1} parent=1 // pred_fallthru
      _
    // Predicated region
    $region14: #{tpu_custom_call.1} parent=1 // pred_check
      _
    $region15: #{tpu_custom_call.1} parent=1 // pred_check_branch
      %22 = sbr.rel (0) target = $region17
    $region16: #{tpu_custom_call.1} parent=1 // pred_region
      _
    $region17: #{tpu_custom_call.1} parent=1 // pred_fallthru
      _
    // Predicated region
    $region18: #{tpu_custom_call.1} parent=1 // pred_check
      _
    $region19: #{tpu_custom_call.1} parent=1 // pred_check_branch
      %24 = sbr.rel (0) target = $region21
    $region20: #{tpu_custom_call.1} parent=1 // pred_region
      _
    $region21: #{tpu_custom_call.1} parent=1 // pred_fallthru
      _
    // Predicated region
    $region22: #{tpu_custom_call.1} parent=1 // pred_check
      _
    $region23: #{tpu_custom_call.1} parent=1 // pred_check_branch
      %26 = sbr.rel (0) target = $region25
    $region24: #{tpu_custom_call.1} parent=1 // pred_region
      _
    $region25: #{tpu_custom_call.1} parent=1 // pred_fallthru
      _
    // Predicated region
    $region26: #{tpu_custom_call.1} parent=1 // pred_check
      _
    $region27: #{tpu_custom_call.1} parent=1 // pred_check_branch
      %28 = sbr.rel (0) target = $region29
    $region28: #{tpu_custom_call.1} parent=1 // pred_region
      _
    $region29: #{tpu_custom_call.1} parent=1 // pred_fallthru
      _
    %v30 = vld [vmem:[%s1] sm:$0xf]
    %v31 = vld [vmem:[%s1 + $0x4] sm:$0xf]
    %v32 = vld [vmem:[%s1 + $0x8] sm:$0xf]
    %v33 = vld [vmem:[%s1 + $0xc] sm:$0xf]
    %v34 = vld [vmem:[%s1 + $0x10] sm:$0xf]
    %v35 = vld [vmem:[%s1 + $0x14] sm:$0xf]
    %v36 = vld [vmem:[%s1 + $0x18] sm:$0xf]
    %v37 = vld [vmem:[%s1 + $0x1c] sm:$0xf]
    %v38 = vld [vmem:[%s1 + $0x20] sm:$0xf]
    %v39 = vld [vmem:[%s1 + $0x24] sm:$0xf]
    %v40 = vld [vmem:[%s0] sm:$0xff]
    %v41 = vld [vmem:[%s0 + $0x8] sm:$0xff]
    %v42 = vld [vmem:[%s0 + $0x10] sm:$0xff]
    %v43 = vld [vmem:[%s0 + $0x18] sm:$0xff]
    %v44 = vld [vmem:[%s2] sm:$0xff]
    %v45 = vld [vmem:[%s2 + $0x8] sm:$0xff]
    %v46 = vld [vmem:[%s2 + $0x10] sm:$0xff]
    %v47 = vld [vmem:[%s2 + $0x18] sm:$0xff]
    %v48 = vld [vmem:[%s2 + $0x20] sm:$0xff]
    %v49 = vld [vmem:[%s2 + $0x28] sm:$0xff]
    %v50 = vld [vmem:[%s2 + $0x30] sm:$0xff]
    %v51 = vld [vmem:[%s2 + $0x38] sm:$0xff]
    %v52 = vld [vmem:[%s2 + $0x40] sm:$0xff]
    %v53 = vld [vmem:[%s2 + $0x48] sm:$0xff]
    %55 = vset.pattern.permute.xlu0 0
    %56 = vperm.xlu0 %55, %v44
    %v57 = vpop.permute.xlu0 %56
    %60 = vset.pattern.permute.xlu0 0
    %61 = vperm.xlu0 %60, %v45
    %v62 = vpop.permute.xlu0 %61
    %65 = vset.pattern.permute.xlu0 0
    %66 = vperm.xlu0 %65, %v46
    %v67 = vpop.permute.xlu0 %66
    %70 = vset.pattern.permute.xlu0 0
    %71 = vperm.xlu0 %70, %v47
    %v72 = vpop.permute.xlu0 %71
    %75 = vset.pattern.permute.xlu0 0
    %76 = vperm.xlu0 %75, %v48
    %v77 = vpop.permute.xlu0 %76
    %80 = vset.pattern.permute.xlu0 0
    %81 = vperm.xlu0 %80, %v49
    %v82 = vpop.permute.xlu0 %81
    %85 = vset.pattern.permute.xlu0 0
    %86 = vperm.xlu0 %85, %v50
    %v87 = vpop.permute.xlu0 %86
    %90 = vset.pattern.permute.xlu0 0
    %91 = vperm.xlu0 %90, %v51
    %v92 = vpop.permute.xlu0 %91
    %95 = vset.pattern.permute.xlu0 0
    %96 = vperm.xlu0 %95, %v52
    %v97 = vpop.permute.xlu0 %96
    %100 = vset.pattern.permute.xlu0 0
    %101 = vperm.xlu0 %100, %v53
    %v102 = vpop.permute.xlu0 %101
    %v114 = vunpack.c.l.b16 %v30
    %v115 = vunpack.c.l.b16 %v31
    %v116 = vunpack.c.l.b16 %v32
    %v117 = vunpack.c.l.b16 %v33
    %v118 = vunpack.c.l.b16 %v34
    %v119 = vunpack.c.l.b16 %v35
    %v120 = vunpack.c.l.b16 %v36
    %v121 = vunpack.c.l.b16 %v37
    %v122 = vunpack.c.l.b16 %v38
    %v123 = vunpack.c.l.b16 %v39
    %v124 = vpack.c.b16 %v115, %v114
    %v125 = vpack.c.b16 %v117, %v116
    %v126 = vpack.c.b16 %v119, %v118
    %v127 = vpack.c.b16 %v121, %v120
    %v128 = vpack.c.b16 %v123, %v122
    %v133 = vunpack.c.l.b16 %v40
    %v134 = vunpack.c.h.b16 %v40
    %v135 = vunpack.c.l.b16 %v41
    %v136 = vunpack.c.h.b16 %v41
    %v137 = vunpack.c.l.b16 %v42
    %v138 = vunpack.c.h.b16 %v42
    %v139 = vunpack.c.l.b16 %v43
    %v140 = vunpack.c.h.b16 %v43
    %v141 = vpack.c.b16 %v135, %v133
    %v142 = vpack.c.b16 %v136, %v134
    %v143 = vpack.c.b16 %v139, %v137
    %v144 = vpack.c.b16 %v140, %v138
    %vm149 = vcmask 261120
    %v151 = vsel %vm149, %v124, 0
    %v154 = vsel %vm149, %v125, 0
    %v157 = vsel %vm149, %v126, 0
    %v160 = vsel %vm149, %v127, 0
    %v163 = vsel %vm149, %v128, 0
    %165 = vmatpush.bf16.msra.mxu0 0
    %166 = vmatpush.bf16.msra.mxu0 0
    %167 = vmatpush.bf16.msra.mxu0 0
    %168 = vmatpush.bf16.msra.mxu0 0
    %169 = vmatpush.bf16.msra.mxu0 0
    %170 = vmatpush.bf16.msra.mxu0 0
    %171 = vmatpush.bf16.msra.mxu0 %v143
    %172 = vmatpush.bf16.msra.mxu0 %v141
    %173 = vmatmul.bf16.gmra.mxu0 %v151
    %v174 = vpop.f32.mrf.mxu0
    %v175 = vadd.f32 %v57, %v174
    %v176 = vpop.f32.mrf.mxu0
    %v177 = vadd.f32 %v62, %v176
    %178 = vmatmul.bf16.gmra.mxu0 %v154
    %v179 = vpop.f32.mrf.mxu0
    %v180 = vadd.f32 %v67, %v179
    %v181 = vpop.f32.mrf.mxu0
    %v182 = vadd.f32 %v72, %v181
    %183 = vmatmul.bf16.gmra.mxu0 %v157
    %v184 = vpop.f32.mrf.mxu0
    %v185 = vadd.f32 %v77, %v184
    %v186 = vpop.f32.mrf.mxu0
    %v187 = vadd.f32 %v82, %v186
    %188 = vmatmul.bf16.gmra.mxu0 %v160
    %v189 = vpop.f32.mrf.mxu0
    %v190 = vadd.f32 %v87, %v189
    %v191 = vpop.f32.mrf.mxu0
    %v192 = vadd.f32 %v92, %v191
    %193 = vmatmul.bf16.gmra.mxu0 %v163
    %v194 = vpop.f32.mrf.mxu0
    %v195 = vadd.f32 %v97, %v194
    %v196 = vpop.f32.mrf.mxu0
    %v197 = vadd.f32 %v102, %v196
    %198 = vdwg.mxu0
    %199 = vmatpush.bf16.msra.mxu0 0
    %200 = vmatpush.bf16.msra.mxu0 0
    %201 = vmatpush.bf16.msra.mxu0 0
    %202 = vmatpush.bf16.msra.mxu0 0
    %203 = vmatpush.bf16.msra.mxu0 0
    %204 = vmatpush.bf16.msra.mxu0 0
    %205 = vmatpush.bf16.msra.mxu0 %v144
    %206 = vmatpush.bf16.msra.mxu0 %v142
    %207 = vmatmul.bf16.gmra.mxu0 %v151
    %v208 = vpop.f32.mrf.mxu0
    %v209 = vadd.f32 %v57, %v208
    %v210 = vpop.f32.mrf.mxu0
    %v211 = vadd.f32 %v62, %v210
    %212 = vmatmul.bf16.gmra.mxu0 %v154
    %v213 = vpop.f32.mrf.mxu0
    %v214 = vadd.f32 %v67, %v213
    %v215 = vpop.f32.mrf.mxu0
    %v216 = vadd.f32 %v72, %v215
    %217 = vmatmul.bf16.gmra.mxu0 %v157
    %v218 = vpop.f32.mrf.mxu0
    %v219 = vadd.f32 %v77, %v218
    %v220 = vpop.f32.mrf.mxu0
    %v221 = vadd.f32 %v82, %v220
    %222 = vmatmul.bf16.gmra.mxu0 %v160
    %v223 = vpop.f32.mrf.mxu0
    %v224 = vadd.f32 %v87, %v223
    %v225 = vpop.f32.mrf.mxu0
    %v226 = vadd.f32 %v92, %v225
    %227 = vmatmul.bf16.gmra.mxu0 %v163
    %v228 = vpop.f32.mrf.mxu0
    %v229 = vadd.f32 %v97, %v228
    %v230 = vpop.f32.mrf.mxu0
    %v231 = vadd.f32 %v102, %v230
    %232 = vdwg.mxu0
    %v233 = vmax.f32 %v175, 0.0
    %v234 = vmax.f32 %v209, 0.0
    %v235 = vmax.f32 %v177, 0.0
    %v236 = vmax.f32 %v211, 0.0
    %v237 = vmax.f32 %v180, 0.0
    %v238 = vmax.f32 %v214, 0.0
    %v239 = vmax.f32 %v182, 0.0
    %v240 = vmax.f32 %v216, 0.0
    %v241 = vmax.f32 %v185, 0.0
    %v242 = vmax.f32 %v219, 0.0
    %v243 = vmax.f32 %v187, 0.0
    %v244 = vmax.f32 %v221, 0.0
    %v245 = vmax.f32 %v190, 0.0
    %v246 = vmax.f32 %v224, 0.0
    %v247 = vmax.f32 %v192, 0.0
    %v248 = vmax.f32 %v226, 0.0
    %v249 = vmax.f32 %v195, 0.0
    %v250 = vmax.f32 %v229, 0.0
    %v251 = vmax.f32 %v197, 0.0
    %v252 = vmax.f32 %v231, 0.0
    %v253 = vld [vmem:[%s3] sm:$0xff]
    %v254 = vld [vmem:[%s3 + $0x8] sm:$0x3]
    %v255 = vld [vmem:[%s4] sm:$0xff]
    %v256 = vld [vmem:[%s4 + $0x8] sm:$0x3]
    %258 = vset.pattern.permute.xlu0 0
    %259 = vperm.xlu0 %258, %v255
    %v260 = vpop.permute.xlu0 %259
    %263 = vset.pattern.permute.xlu0 0
    %264 = vperm.xlu0 %263, %v256
    %v265 = vpop.permute.xlu0 %264
    %vm267 = vcmask 654336
    %v269 = vsel %vm267, %v253, 0
    %v272 = vsel %vm267, %v254, 0
    %274 = vmatpush.msra.mxu0 0.0
    %275 = vmatpush.msra.mxu0 0.0
    %276 = vmatpush.msra.mxu0 0.0
    %277 = vmatpush.msra.mxu0 0.0
    %278 = vmatpush.msra.mxu0 0.0
    %279 = vmatpush.msra.mxu0 0.0
    %280 = vmatpush.msra.mxu0 %v251
    %281 = vmatpush.msra.mxu0 %v249
    %282 = vmatpush.msra.mxu0 %v247
    %283 = vmatpush.msra.mxu0 %v245
    %284 = vmatpush.msra.mxu0 %v243
    %285 = vmatpush.msra.mxu0 %v241
    %286 = vmatpush.msra.mxu0 %v239
    %287 = vmatpush.msra.mxu0 %v237
    %288 = vmatpush.msra.mxu0 %v235
    %289 = vmatpush.msra.mxu0 %v233
    %290 = vmatmul.f32.gmra.mxu0 %v269
    %v291 = vpop.f32.mrf.mxu0
    %v292 = vadd.f32 %v260, %v291
    %293 = vmatmul.f32.gmra.mxu0 %v272
    %v294 = vpop.f32.mrf.mxu0
    %v295 = vadd.f32 %v265, %v294
    %296 = vdwg.mxu0
    %297 = vmatpush.msra.mxu0 0.0
    %298 = vmatpush.msra.mxu0 0.0
    %299 = vmatpush.msra.mxu0 0.0
    %300 = vmatpush.msra.mxu0 0.0
    %301 = vmatpush.msra.mxu0 0.0
    %302 = vmatpush.msra.mxu0 0.0
    %303 = vmatpush.msra.mxu0 %v252
    %304 = vmatpush.msra.mxu0 %v250
    %305 = vmatpush.msra.mxu0 %v248
    %306 = vmatpush.msra.mxu0 %v246
    %307 = vmatpush.msra.mxu0 %v244
    %308 = vmatpush.msra.mxu0 %v242
    %309 = vmatpush.msra.mxu0 %v240
    %310 = vmatpush.msra.mxu0 %v238
    %311 = vmatpush.msra.mxu0 %v236
    %312 = vmatpush.msra.mxu0 %v234
    %313 = vmatmul.f32.gmra.mxu0 %v269
    %v314 = vpop.f32.mrf.mxu0
    %v315 = vadd.f32 %v260, %v314
    %316 = vmatmul.f32.gmra.mxu0 %v272
    %v317 = vpop.f32.mrf.mxu0
    %v318 = vadd.f32 %v265, %v317
    %319 = vdwg.mxu0
    %v320 = vmax.f32 %v292, 0.0
    %v321 = vmax.f32 %v315, 0.0
    %v322 = vmax.f32 %v295, 0.0
    %v323 = vmax.f32 %v318, 0.0
    %v324 = vld [vmem:[%s5] sm:$0xff]
    %v325 = vld [vmem:[%s5 + $0x8] sm:$0x3]
    %327 = vset.pattern.permute.xlu0 0
    %328 = vperm.xlu0 %327, %v324
    %v329 = vpop.permute.xlu0 %328
    %332 = vset.pattern.permute.xlu0 0
    %333 = vperm.xlu0 %332, %v325
    %v334 = vpop.permute.xlu0 %333
    %v336 = vmul.f32 %v320, %v329
    %v337 = vmul.f32 %v321, %v329
    %v338 = vmul.f32 %v322, %v334
    %v339 = vmul.f32 %v323, %v334
    %vm340 = vcmask 1041408
    %v341 = vsel %vm340, %v338, 0.0
    %v342 = vadd.f32 %v336, %v341
    %v343 = vrot.slane %v342, 4
    %v344 = vadd.f32 %v342, %v343
    %v345 = vrot.slane %v344, 2
    %v346 = vadd.f32 %v344, %v345
    %v347 = vrot.slane %v346, 1
    %v348 = vadd.f32 %v346, %v347
    %v349 = vsel %vm340, %v339, 0.0
    %v350 = vadd.f32 %v337, %v349
    %v351 = vrot.slane %v350, 4
    %v352 = vadd.f32 %v350, %v351
    %v353 = vrot.slane %v352, 2
    %v354 = vadd.f32 %v352, %v353
    %v355 = vrot.slane %v354, 1
    %v356 = vadd.f32 %v354, %v355
    %v357 = vld [vmem:[#allocation2] sm:$0x1]
    %359 = vset.pattern.permute.xlu0 0
    %360 = vperm.xlu0 %359, %v357
    %v361 = vpop.permute.xlu0 %360
    %v363 = vperm.slane %v361, 0
    %v364 = vadd.f32 %v348, %v363
    %v365 = vadd.f32 %v356, %v363
    %v368 = vrot.slane %v365, 7
    %vm369 = vcmask 1040384
    %v370 = vsel %vm369, %v364, %v368
    %v372 = vlaneseq
    %vm373 = vcmp.ge.s32.totalorder %v372, 0
    %vm374 = vcmp.lt.s32.totalorder %v372, 256
    %vm375 = vmand %vm373, %vm374
    %376 = vst.msk [vmem:[#allocation3] sm:$0x3] %vm375, %v370
    // Predicated region
    $region30: #{tpu_custom_call.1} parent=1 // pred_check
      _
    $region31: #{tpu_custom_call.1} parent=1 // pred_check_branch
      %378 = sbr.rel (0) target = $region33
    $region32: #{tpu_custom_call.1} parent=1 // pred_region
      %380 = vsyncadd [#allocation4], 0
      %s382 = sshll.u32 [#allocation3], 4
      %s383 = int_to_ptr.vmem [resolvable:$true] %s382
      %s384 = sshll.u32 %s7, 4
      %s385 = int_to_ptr.hbm [resolvable:$true] %s384
      %387 = dma.vmem_to_hbm [thread:$0]  %s383, 32, %s385, [#allocation4]
    $region33: #{tpu_custom_call.1} parent=1 // pred_fallthru
      _
    // Predicated region
    $region34: #{tpu_custom_call.1} parent=1 // pred_check
      _
    $region35: #{tpu_custom_call.1} parent=1 // pred_check_branch
      %389 = sbr.rel (0) target = $region37
    $region36: #{tpu_custom_call.1} parent=1 // pred_region
      %391 = dma.done [#allocation4], 32
    $region37: #{tpu_custom_call.1} parent=1 // pred_fallthru
      _
    %392 = vsyncpa [#allocation4], 1

</llo_original>
